<compile_context>
chip_gen: v7x
topology: tpu7x:2x2x1
jax: 0.10.0
libtpu: 0.0.40
codegen_flags: <defaults>
</compile_context>

<pallas_src>
import numpy as np

import jax
import jax.numpy as jnp
from jax.experimental import pallas as pl
from jax.experimental.pallas import tpu as pltpu


def _round_up(x, m):
    return ((x + m - 1) // m) * m


# ----------------------------------------------------------------------------
# Pallas kernel: single packed complex matmul + bias, lane-dense output.
#   a_ref : (2K, tm)     packed patches  [real(K) ; imag(K)]   (M on lanes)
#   w_ref : (2Cout, 2K)  packed weights  [[wr^T, -wi^T], [wi^T, wr^T]]
#   b_ref : (2Cout, 1)   packed bias     [b_r - b_i ; b_r + b_i]
#   o_ref : (2Cout, tm)  packed output   [o_real(Cout) ; o_imag(Cout)]
# ----------------------------------------------------------------------------
def _cconv_kernel(a_ref, w_ref, b_ref, o_ref):
    o_ref[...] = jnp.dot(w_ref[...], a_ref[...],
                         preferred_element_type=jnp.float32) + b_ref[...]


def _pick_tm(M, target=1024):
    tm = min(target, _round_up(M, 128))
    # Prefer >= 2 grid steps so the "parallel" axis can be split across
    # TensorCores (v7x megacore) whenever M is large enough to split.
    if M > 128 and pl.cdiv(M, tm) < 2:
        tm = _round_up(pl.cdiv(M, 2), 128)
    return max(tm, 128)


def _cconv_matmul(a_t, w_t, b_t, *, tm=None):
    """a_t: (2K, M) f32, w_t: (2Cout, 2K) f32, b_t: (2Cout, 1) f32
       -> (2Cout, M) f32."""
    K2, M = a_t.shape
    Cout2 = w_t.shape[0]
    if tm is None:
        tm = _pick_tm(M)
    grid = (pl.cdiv(M, tm),)

    return pl.pallas_call(
        _cconv_kernel,
        out_shape=jax.ShapeDtypeStruct((Cout2, M), jnp.float32),
        grid=grid,
        in_specs=[
            pl.BlockSpec((K2, tm), lambda i: (0, i)),       # patches (tiled M)
            pl.BlockSpec((Cout2, K2), lambda i: (0, 0)),    # packed weights
            pl.BlockSpec((Cout2, 1), lambda i: (0, 0)),     # packed bias
        ],
        out_specs=pl.BlockSpec((Cout2, tm), lambda i: (0, i)),
        compiler_params=pltpu.CompilerParams(
            dimension_semantics=("parallel",)),
    )(a_t, w_t, b_t)


# ----------------------------------------------------------------------------
# Glue: transposed im2col (single pass over the complex-merged input)
# ----------------------------------------------------------------------------
def _im2col_t(x, kh, kw, stride, padding):
    """x: (N, C, H, W) -> (C*kh*kw, N*Ho*Wo) patch matrix, K-major / M on the
    last (lane) axis.  K order = (C, kh, kw); M order = (N, Ho, Wo)."""
    N, C, H, W = x.shape
    xp = jnp.pad(x, ((0, 0), (0, 0), (padding, padding), (padding, padding)))
    Hp, Wp = H + 2 * padding, W + 2 * padding
    Ho = (Hp - kh) // stride + 1
    Wo = (Wp - kw) // stride + 1
    pieces = []
    for i in range(kh):
        for j in range(kw):
            pieces.append(
                xp[:, :, i:i + (Ho - 1) * stride + 1:stride,
                         j:j + (Wo - 1) * stride + 1:stride])
    p = jnp.stack(pieces, axis=0)               # (kh*kw, N, C, Ho, Wo)
    p = p.transpose(2, 0, 1, 3, 4)              # (C, kh*kw, N, Ho, Wo)
    p = p.reshape(C * kh * kw, N * Ho * Wo)     # (K, M)
    return p, Ho, Wo


class CConv2dPallas:
    """Complex-valued conv2d (forward only), matching the PyTorch CConv2d."""

    def __init__(self, in_channels, out_channels, kernel_size, stride,
                 padding=0, key=None):
        self.in_channels = in_channels
        self.out_channels = out_channels
        self.kernel_size = kernel_size
        self.stride = stride
        self.padding = padding

        kh = kw = kernel_size
        key = jax.random.PRNGKey(0) if key is None else key
        k0, k1, k2, k3 = jax.random.split(key, 4)

        # Xavier-uniform weight init (as in the PyTorch module)
        fan_in = in_channels * kh * kw
        fan_out = out_channels * kh * kw
        bound_w = float(np.sqrt(6.0 / (fan_in + fan_out)))
        self.w_real = jax.random.uniform(
            k0, (out_channels, in_channels, kh, kw),
            minval=-bound_w, maxval=bound_w, dtype=jnp.float32)
        self.w_im = jax.random.uniform(
            k1, (out_channels, in_channels, kh, kw),
            minval=-bound_w, maxval=bound_w, dtype=jnp.float32)

        # Default PyTorch Conv2d bias init: U(-1/sqrt(fan_in), 1/sqrt(fan_in))
        bound_b = float(1.0 / np.sqrt(fan_in))
        self.b_real = jax.random.uniform(
            k2, (out_channels,), minval=-bound_b, maxval=bound_b,
            dtype=jnp.float32)
        self.b_im = jax.random.uniform(
            k3, (out_channels,), minval=-bound_b, maxval=bound_b,
            dtype=jnp.float32)

    def __call__(self, x):
        # x: (N, C_in, H, W, 2) float32
        N, C, H, W, _ = x.shape
        kh = kw = self.kernel_size
        Cout = self.out_channels
        K = C * kh * kw

        # Merge complex dim into channels (real channels first, imag second)
        # so a SINGLE im2col produces the packed (2K, M) patch matrix.
        x2 = jnp.moveaxis(x, -1, 1).reshape(N, 2 * C, H, W)
        a_t, Ho, Wo = _im2col_t(x2, kh, kw, self.stride, self.padding)  # (2K, M)

        # Packed complex weight:  [o_r ; o_i] = [[wr, -wi],[wi, wr]] [a_r ; a_i]
        # Keep f32 (v5e has no bf16 VPU; shapes here are HBM-bound anyway).
        wrT = self.w_real.reshape(Cout, K)
        wiT = self.w_im.reshape(Cout, K)
        w_t = jnp.concatenate(
            [jnp.concatenate([wrT, -wiT], axis=1),
             jnp.concatenate([wiT, wrT], axis=1)], axis=0)          # (2Cout, 2K)

        # Packed bias (precombined once): real rows get (b_r - b_i),
        # imag rows get (b_r + b_i).
        b_t = jnp.concatenate([self.b_real - self.b_im,
                               self.b_real + self.b_im])[:, None]   # (2Cout, 1)

        o_t = _cconv_matmul(a_t, w_t, b_t)                          # (2Cout, M)
        o_t = o_t.reshape(2, Cout, N, Ho, Wo)                       # [0]=re, [1]=im
        return o_t.transpose(2, 1, 3, 4, 0)                         # (N,Cout,Ho,Wo,2)


# ----------------------------------------------------------------------------
# Reference (plain JAX) for verification
# ----------------------------------------------------------------------------
def _conv_ref(x, w, b, stride, padding):
    out = jax.lax.conv_general_dilated(
        x, w, (stride, stride), [(padding, padding), (padding, padding)],
        dimension_numbers=("NCHW", "OIHW", "NCHW"))
    return out + b[None, :, None, None]


def _cconv_ref(mod, x):
    x_real = x[..., 0]
    x_im = x[..., 1]
    c_real = (_conv_ref(x_real, mod.w_real, mod.b_real, mod.stride, mod.padding)
              - _conv_ref(x_im, mod.w_im, mod.b_im, mod.stride, mod.padding))
    c_im = (_conv_ref(x_real, mod.w_im, mod.b_im, mod.stride, mod.padding)
            + _conv_ref(x_im, mod.w_real, mod.b_real, mod.stride, mod.padding))
    return jnp.stack([c_real, c_im], axis=-1)


if __name__ == "__main__":
    key = jax.random.PRNGKey(0)
    k_x, k_p = jax.random.split(key)

    N, C_in, H, W = 2, 4, 16, 16
    C_out, ksize, stride, padding = 8, 3, 1, 1

    x = jax.random.normal(k_x, (N, C_in, H, W, 2), dtype=jnp.float32)

    mod = CConv2dPallas(C_in, C_out, ksize, stride, padding, key=k_p)

    fwd = jax.jit(lambda v: mod(v))
    out = jax.block_until_ready(fwd(x))

    ref = jax.block_until_ready(_cconv_ref(mod, x))

    assert out.shape == ref.shape, (out.shape, ref.shape)
    np.testing.assert_allclose(np.asarray(out), np.asarray(ref),
                               rtol=1e-4, atol=1e-4)
    print("KERNEL_OK")
</pallas_src>

<mosaic_0001>
module attributes {stable_mosaic.version = 11 : i64} {
  func.func @_cconv_kernel(%arg0: i32, %arg1: memref<72x256xf32, #tpu.memory_space<vmem>>, %arg2: memref<16x72xf32, #tpu.memory_space<vmem>>, %arg3: memref<16x1xf32, #tpu.memory_space<vmem>>, %arg4: memref<16x256xf32, #tpu.memory_space<vmem>>) attributes {dimension_semantics = [#tpu.dimension_semantics<parallel>], iteration_bounds = array<i64: 2>, scalar_prefetch = 0 : i64, scratch_operands = 0 : i64, tpu.core_type = #tpu.core_type<tc>, window_params = [{transform_indices = @transform_0, window_bounds = array<i64: 72, 256>}, {pipeline_mode = #tpu.pipeline_mode<synchronous>, transform_indices = @transform_1, window_bounds = array<i64: 16, 72>}, {pipeline_mode = #tpu.pipeline_mode<synchronous>, transform_indices = @transform_2, window_bounds = array<i64: 16, 1>}, {transform_indices = @transform_3, window_bounds = array<i64: 16, 256>}]} {
    %c0 = arith.constant 0 : index
    %c0_0 = arith.constant 0 : index
    %0 = vector.load %arg2[%c0, %c0_0] : memref<16x72xf32, #tpu.memory_space<vmem>>, vector<16x72xf32>
    %c0_1 = arith.constant 0 : index
    %c0_2 = arith.constant 0 : index
    %1 = vector.load %arg1[%c0_1, %c0_2] : memref<72x256xf32, #tpu.memory_space<vmem>>, vector<72x256xf32>
    %cst = arith.constant dense<0.000000e+00> : vector<16x256xf32>
    %2 = tpu.matmul %0, %1, %cst {dimension_numbers = #tpu.dot_dimension_numbers<[1], [0], [0], [1], [0, 0, 1, 1], [], []>} : vector<16x72xf32>, vector<72x256xf32>, vector<16x256xf32> -> vector<16x256xf32>
    %c0_3 = arith.constant 0 : index
    %c0_4 = arith.constant 0 : index
    %3 = vector.load %arg3[%c0_3, %c0_4] : memref<16x1xf32, #tpu.memory_space<vmem>>, vector<16x1xf32>
    %4 = vector.broadcast %3 : vector<16x1xf32> to vector<16x256xf32>
    %5 = arith.addf %2, %4 : vector<16x256xf32>
    %c0_5 = arith.constant 0 : index
    %c0_6 = arith.constant 0 : index
    %6 = vector.load %arg4[%c0_5, %c0_6] : memref<16x256xf32, #tpu.memory_space<vmem>>, vector<16x256xf32>
    tpu.vector_store %arg4[%c0_5, %c0_6], %5 {strides = array<i32>} : memref<16x256xf32, #tpu.memory_space<vmem>>, vector<16x256xf32>,
    return
  }
  func.func @transform_0(%arg0: i32) -> (i32, i32) {
    %c0_i32 = arith.constant 0 : i32
    %c0_i32_0 = arith.constant 0 : i32
    return %c0_i32, %arg0 : i32, i32
  }
  func.func @transform_1(%arg0: i32) -> (i32, i32) {
    %c0_i32 = arith.constant 0 : i32
    %c0_i32_0 = arith.constant 0 : i32
    %c0_i32_1 = arith.constant 0 : i32
    return %c0_i32, %c0_i32_0 : i32, i32
  }
  func.func @transform_2(%arg0: i32) -> (i32, i32) {
    %c0_i32 = arith.constant 0 : i32
    %c0_i32_0 = arith.constant 0 : i32
    %c0_i32_1 = arith.constant 0 : i32
    return %c0_i32, %c0_i32_0 : i32, i32
  }
  func.func @transform_3(%arg0: i32) -> (i32, i32) {
    %c0_i32 = arith.constant 0 : i32
    %c0_i32_0 = arith.constant 0 : i32
    return %c0_i32, %arg0 : i32, i32
  }
}

</mosaic_0001>

<llo_original>
// kernel: _lambda_.1
$region0: #{_lambda_.1}
  #allocation0 [shape = 'u32[]', space=smem, size = 0x4, offset = 0x4, fixed_abs, tag = 'smem constant byte address 0x4 - core index']
  #allocation1 [shape = 'u32[144,128]{1,0:T(1,128)}', space=vmem, size = 0x12000, scoped, tag = 'internal scratch']
  %s0 = inlined_call_operand.vmem [shape: f32[72,512], index: 0, kind: input, shape index: {}]
  %s1 = inlined_call_operand.vmem [shape: f32[16,72], index: 1, kind: input, shape index: {}]
  %s2 = inlined_call_operand.vmem [shape: f32[16,1], index: 2, kind: input, shape index: {}]
  %s3 = inlined_call_operand.vmem [shape: f32[16,512], index: 3, kind: output, shape index: {}]
  %s4 = sld [smem:[#allocation0]]
  $region87: #{_lambda_.1} parent=0
    _
  %s6 = ssub.s32 1, %s4
  %s7 = scalar_select 0, %s6, %s4
  $region1: #{_lambda_.1} parent=0
    #allocation2 [shape = 'u8[147456]{0}', space=vmem, size = 0x24000, scoped, tag = 'input window, operand 0']
    #allocation3 [shape = 'u8[32768]{0}', space=vmem, size = 0x8000, scoped, tag = 'output window, operand 0']
    loop: start=0, step=1, limit=4
    $region2: #{_lambda_.1} parent=1 // loop_pre_header
      _
    $region3: #{_lambda_.1} parent=1 // loop_header
      %s9 = sphi 0, %s13
      %p10 = scmp.ge.s32.totalorder %s9, 4
      %s19 = sphi 0, %s21
      %s22 = sphi 0, %s19
      %s23 = sphi 0, %s22
      %s39 = sphi 0, %s23
      %s43 = sphi 0, %s43
      %s45 = sphi 0, %s43
      %s46 = sphi 0, %s45
      %s60 = sphi 0, %s46
      %s64 = sphi 0, %s64
      %s66 = sphi 0, %s64
      %s67 = sphi 0, %s66
      %s81 = sphi 0, %s67
      %s87 = sphi 0, %s89
      %s90 = sphi 0, %s87
      %s91 = sphi 0, %s90
      %s107 = sphi 0, %s91
    $region4: #{_lambda_.1} parent=1 // loop_header_branch
      %12 = sbr.rel (%p10) target = $region8
    $region5: #{_lambda_.1} parent=1 // loop_body
      %s14 = ssub.s32 %s9, 1
      %s15 = ssub.s32 %s9, 2
      %s16 = sadd.s32 %s9, 1
      %s17 = ssub.s32 %s9, %s16
      %p18 = scmp.eq.s32.totalorder %s17, 0
      %s20 = sadd.s32 %s19, 1
      %s21 = scalar_select %p18, %s19, %s20
      %p24 = pneg %p18
      %p25 = scmp.eq.s32.totalorder %s9, 1
      %p26 = por %p24, %p25
      %p27 = scmp.ne.s32.totalorder %s19, %s22
      %p28 = scmp.eq.s32.totalorder %s9, 0
      %p29 = por %p27, %p28
      %p30 = scmp.ne.s32.totalorder %s19, %s22
      %p31 = scmp.eq.s32.totalorder %s14, 1
      %p32 = por %p30, %p31
      %p33 = scmp.ne.s32.totalorder %s22, %s23
      %p34 = scmp.eq.s32.totalorder %s14, 0
      %p35 = por %p33, %p34
      %p36 = scmp.ne.s32.totalorder %s22, %s23
      %p37 = scmp.eq.s32.totalorder %s15, 1
      %p38 = por %p36, %p37
      %p40 = scmp.ne.s32.totalorder %s23, %s39
      %p41 = scmp.eq.s32.totalorder %s15, 0
      %p42 = por %p40, %p41
      %s44 = sadd.s32 %s43, 1
      %p47 = scmp.eq.s32.totalorder %s9, 1
      %p48 = scmp.ne.s32.totalorder %s43, %s45
      %p49 = scmp.eq.s32.totalorder %s9, 0
      %p50 = por %p48, %p49
      %p51 = scmp.ne.s32.totalorder %s43, %s45
      %p52 = scmp.eq.s32.totalorder %s14, 1
      %p53 = por %p51, %p52
      %p54 = scmp.ne.s32.totalorder %s45, %s46
      %p55 = scmp.eq.s32.totalorder %s14, 0
      %p56 = por %p54, %p55
      %p57 = scmp.ne.s32.totalorder %s45, %s46
      %p58 = scmp.eq.s32.totalorder %s15, 1
      %p59 = por %p57, %p58
      %p61 = scmp.ne.s32.totalorder %s46, %s60
      %p62 = scmp.eq.s32.totalorder %s15, 0
      %p63 = por %p61, %p62
      %s65 = sadd.s32 %s64, 1
      %p68 = scmp.eq.s32.totalorder %s9, 1
      %p69 = scmp.ne.s32.totalorder %s64, %s66
      %p70 = scmp.eq.s32.totalorder %s9, 0
      %p71 = por %p69, %p70
      %p72 = scmp.ne.s32.totalorder %s64, %s66
      %p73 = scmp.eq.s32.totalorder %s14, 1
      %p74 = por %p72, %p73
      %p75 = scmp.ne.s32.totalorder %s66, %s67
      %p76 = scmp.eq.s32.totalorder %s14, 0
      %p77 = por %p75, %p76
      %p78 = scmp.ne.s32.totalorder %s66, %s67
      %p79 = scmp.eq.s32.totalorder %s15, 1
      %p80 = por %p78, %p79
      %p82 = scmp.ne.s32.totalorder %s67, %s81
      %p83 = scmp.eq.s32.totalorder %s15, 0
      %p84 = por %p82, %p83
      %s85 = ssub.s32 %s9, %s16
      %p86 = scmp.eq.s32.totalorder %s85, 0
      %s88 = sadd.s32 %s87, 1
      %s89 = scalar_select %p86, %s87, %s88
      %p92 = pneg %p86
      %p93 = scmp.eq.s32.totalorder %s9, 1
      %p94 = por %p92, %p93
      %p95 = scmp.ne.s32.totalorder %s87, %s90
      %p96 = scmp.eq.s32.totalorder %s9, 0
      %p97 = por %p95, %p96
      %p98 = scmp.ne.s32.totalorder %s87, %s90
      %p99 = scmp.eq.s32.totalorder %s14, 1
      %p100 = por %p98, %p99
      %p101 = scmp.ne.s32.totalorder %s90, %s91
      %p102 = scmp.eq.s32.totalorder %s14, 0
      %p103 = por %p101, %p102
      %p104 = scmp.ne.s32.totalorder %s90, %s91
      %p105 = scmp.eq.s32.totalorder %s15, 1
      %p106 = por %p104, %p105
      %p108 = scmp.ne.s32.totalorder %s91, %s107
      %p109 = scmp.eq.s32.totalorder %s15, 0
      %p110 = por %p108, %p109
      %p111 = scmp.le.s32.totalorder 1, %s9
      %p112 = scmp.lt.s32.totalorder %s9, 3
      %p113 = pnand %p111, %p112
      %p114 = pneg %p113
      // Predicated region
      $region9: #{_lambda_.1} parent=5 // pred_check
        _
      $region10: #{_lambda_.1} parent=5 // pred_check_branch
        %116 = sbr.rel (%p113) target = $region12
      $region11: #{_lambda_.1} parent=5 // pred_region
        %s117 = ssub.s32 %s9, 1
        // Predicated region
        $region13: #{_lambda_.1} parent=11 // pred_check
          %p118 = pneg %p56
        $region14: #{_lambda_.1} parent=11 // pred_check_branch
          %120 = sbr.rel (%p118) target = $region16
        $region15: #{_lambda_.1} parent=11 // pred_region
          _
        $region16: #{_lambda_.1} parent=11 // pred_fallthru
          _
        // Predicated region
        $region17: #{_lambda_.1} parent=11 // pred_check
          %p121 = pneg %p77
        $region18: #{_lambda_.1} parent=11 // pred_check_branch
          %123 = sbr.rel (%p121) target = $region20
        $region19: #{_lambda_.1} parent=11 // pred_region
          _
        $region20: #{_lambda_.1} parent=11 // pred_fallthru
          _
      $region12: #{_lambda_.1} parent=5 // pred_fallthru
        _
      %p124 = scmp.lt.s32.totalorder %s9, 2
      // Predicated region
      $region21: #{_lambda_.1} parent=5 // pred_check
        %p125 = pneg %p124
      $region22: #{_lambda_.1} parent=5 // pred_check_branch
        %127 = sbr.rel (%p125) target = $region24
      $region23: #{_lambda_.1} parent=5 // pred_region
        // Predicated region
        $region25: #{_lambda_.1} parent=23 // pred_check
          %p128 = pneg %p29
        $region26: #{_lambda_.1} parent=23 // pred_check_branch
          %130 = sbr.rel (%p128) target = $region28
        $region27: #{_lambda_.1} parent=23 // pred_region
          %s131 = sand.u32 %s19, 1
          %s132 = sand.u32 %s19, 1
          %s133 = smul.addr %s132, 144
          %s134 = scalar_lea.vmem [#allocation2], %s133
          %s135 = smul.u32 2, %s9
          %s136 = smul.addr %s135, 8
          %s137 = scalar_lea.vmem %s0, %s136
          // Predicated region
          $region29: #{_lambda_.1} parent=27 // pred_check
            _
          $region30: #{_lambda_.1} parent=27 // pred_check_branch
            %139 = sbr.rel (0) target = $region32
          $region31: #{_lambda_.1} parent=27 // pred_region
            // Predicated region
            $region33: #{_lambda_.1} parent=31 // pred_check
              _
            $region34: #{_lambda_.1} parent=31 // pred_check_branch
              %141 = sbr.rel (0) target = $region36
            $region35: #{_lambda_.1} parent=31 // pred_region
              loop: start=0, step=1, limit=1
              $region37: #{_lambda_.1} parent=35 // loop_pre_header
                _
              $region38: #{_lambda_.1} parent=35 // loop_header
                %s143 = sphi 0, %s147
                %p144 = scmp.ge.s32.totalorder %s143, 1
                %s148 = sphi %s137, %s137
                %s149 = sphi %s134, %s134
              $region39: #{_lambda_.1} parent=35 // loop_header_branch
                %146 = sbr.rel (%p144) target = $region43
              $region40: #{_lambda_.1} parent=35 // loop_body
                %v150 = vld [vmem:[%s148] sm:$0xff]
                %151 = vst [vmem:[%s149] sm:$0xff] %v150
                %v152 = vld [vmem:[%s148 + $0x8] sm:$0xff]
                %153 = vst [vmem:[%s149 + $0x8] sm:$0xff] %v152
                %v154 = vld [vmem:[%s148 + $0x20] sm:$0xff]
                %155 = vst [vmem:[%s149 + $0x10] sm:$0xff] %v154
                %v156 = vld [vmem:[%s148 + $0x28] sm:$0xff]
                %157 = vst [vmem:[%s149 + $0x18] sm:$0xff] %v156
                %v158 = vld [vmem:[%s148 + $0x40] sm:$0xff]
                %159 = vst [vmem:[%s149 + $0x20] sm:$0xff] %v158
                %v160 = vld [vmem:[%s148 + $0x48] sm:$0xff]
                %161 = vst [vmem:[%s149 + $0x28] sm:$0xff] %v160
                %v162 = vld [vmem:[%s148 + $0x60] sm:$0xff]
                %163 = vst [vmem:[%s149 + $0x30] sm:$0xff] %v162
                %v164 = vld [vmem:[%s148 + $0x68] sm:$0xff]
                %165 = vst [vmem:[%s149 + $0x38] sm:$0xff] %v164
                %v166 = vld [vmem:[%s148 + $0x80] sm:$0xff]
                %167 = vst [vmem:[%s149 + $0x40] sm:$0xff] %v166
                %v168 = vld [vmem:[%s148 + $0x88] sm:$0xff]
                %169 = vst [vmem:[%s149 + $0x48] sm:$0xff] %v168
                %v170 = vld [vmem:[%s148 + $0xa0] sm:$0xff]
                %171 = vst [vmem:[%s149 + $0x50] sm:$0xff] %v170
                %v172 = vld [vmem:[%s148 + $0xa8] sm:$0xff]
                %173 = vst [vmem:[%s149 + $0x58] sm:$0xff] %v172
                %v174 = vld [vmem:[%s148 + $0xc0] sm:$0xff]
                %175 = vst [vmem:[%s149 + $0x60] sm:$0xff] %v174
                %v176 = vld [vmem:[%s148 + $0xc8] sm:$0xff]
                %177 = vst [vmem:[%s149 + $0x68] sm:$0xff] %v176
                %v178 = vld [vmem:[%s148 + $0xe0] sm:$0xff]
                %179 = vst [vmem:[%s149 + $0x70] sm:$0xff] %v178
                %v180 = vld [vmem:[%s148 + $0xe8] sm:$0xff]
                %181 = vst [vmem:[%s149 + $0x78] sm:$0xff] %v180
                %v182 = vld [vmem:[%s148 + $0x100] sm:$0xff]
                %183 = vst [vmem:[%s149 + $0x80] sm:$0xff] %v182
                %v184 = vld [vmem:[%s148 + $0x108] sm:$0xff]
                %185 = vst [vmem:[%s149 + $0x88] sm:$0xff] %v184
              $region41: #{_lambda_.1} parent=35 // loop_footer
                %s147 = sadd.s32 1, %s143
              $region42: #{_lambda_.1} parent=35 // loop_footer_branch
                %142 = sbr.rel target = $region38
              $region43: #{_lambda_.1} parent=35 // loop_exit
                _
            $region36: #{_lambda_.1} parent=31 // pred_fallthru
              _
            // Predicated region
            $region44: #{_lambda_.1} parent=31 // pred_check
              _
            $region45: #{_lambda_.1} parent=31 // pred_check_branch
              %187 = sbr.rel target = $region47
            $region46: #{_lambda_.1} parent=31 // pred_region
              _
            $region47: #{_lambda_.1} parent=31 // pred_fallthru
              _
          $region32: #{_lambda_.1} parent=27 // pred_fallthru
            _
          %188 = vnop
        $region28: #{_lambda_.1} parent=23 // pred_fallthru
          _
      $region24: #{_lambda_.1} parent=5 // pred_fallthru
        _
      %p189 = scmp.le.s32.totalorder 1, %s9
      %p190 = scmp.lt.s32.totalorder %s9, 3
      %p191 = pnand %p189, %p190
      %p192 = pneg %p191
      // Predicated region
      $region48: #{_lambda_.1} parent=5 // pred_check
        _
      $region49: #{_lambda_.1} parent=5 // pred_check_branch
        %194 = sbr.rel (%p191) target = $region51
      $region50: #{_lambda_.1} parent=5 // pred_region
        %s195 = ssub.s32 %s9, 1
        %s196 = sand.u32 %s22, 1
        %s197 = sand.u32 %s22, 1
        %s198 = smul.addr %s197, 144
        %s199 = scalar_lea.vmem [#allocation2], %s198
        // Predicated region
        $region52: #{_lambda_.1} parent=50 // pred_check
          %p200 = pneg %p35
        $region53: #{_lambda_.1} parent=50 // pred_check_branch
          %202 = sbr.rel (%p200) target = $region55
        $region54: #{_lambda_.1} parent=50 // pred_region
          _
        $region55: #{_lambda_.1} parent=50 // pred_fallthru
          _
        %s203 = sand.u32 %s22, 1
        %s204 = sand.u32 %s22, 1
        %s205 = smul.addr %s204, 144
        %s206 = scalar_lea.vmem [#allocation2], %s205
        %p207 = pneg %p35
        %p208 = pneg %p32
        %p209 = pneg %p56
        %p210 = pneg %p53
        %p211 = pneg %p77
        %p212 = pneg %p74
        %p213 = pneg %p103
        %p214 = pneg %p100
        %s215 = sand.u32 %s90, 1
        %s216 = sand.u32 %s90, 1
        %s217 = smul.addr %s216, 32
        %s218 = scalar_lea.vmem [#allocation3], %s217
        %s219 = smul.u32 2, %s14
        %s220 = smul.u32 2, %s14
        %v221 = vld [vmem:[%s1] sm:$0xff]
        %v222 = vld [vmem:[%s1 + $0x8] sm:$0xff]
        %v223 = vld [vmem:[%s199] sm:$0xff]
        %v224 = vld [vmem:[%s199 + $0x8] sm:$0xff]
        %v225 = vld [vmem:[%s199 + $0x10] sm:$0xff]
        %v226 = vld [vmem:[%s199 + $0x18] sm:$0xff]
        %v227 = vld [vmem:[%s199 + $0x20] sm:$0xff]
        %v228 = vld [vmem:[%s199 + $0x28] sm:$0xff]
        %v229 = vld [vmem:[%s199 + $0x30] sm:$0xff]
        %v230 = vld [vmem:[%s199 + $0x38] sm:$0xff]
        %v231 = vld [vmem:[%s199 + $0x40] sm:$0xff]
        %v232 = vld [vmem:[%s199 + $0x48] sm:$0xff]
        %v233 = vld [vmem:[%s199 + $0x50] sm:$0xff]
        %v234 = vld [vmem:[%s199 + $0x58] sm:$0xff]
        %v235 = vld [vmem:[%s199 + $0x60] sm:$0xff]
        %v236 = vld [vmem:[%s199 + $0x68] sm:$0xff]
        %v237 = vld [vmem:[%s199 + $0x70] sm:$0xff]
        %v238 = vld [vmem:[%s199 + $0x78] sm:$0xff]
        %v239 = vld [vmem:[%s199 + $0x80] sm:$0xff]
        %v240 = vld [vmem:[%s199 + $0x88] sm:$0xff]
        %v241 = vld [vmem:[%s2] sm:$0xff]
        %v242 = vld [vmem:[%s2 + $0x8] sm:$0xff]
        %244 = vset.pattern.permute.xlu0 0
        %245 = vperm.xlu0 %244, %v241
        %v246 = vpop.permute.xlu0 %245
        %249 = vset.pattern.permute.xlu0 0
        %250 = vperm.xlu0 %249, %v242
        %v251 = vpop.permute.xlu0 %250
        %vm253 = vcmask 588800
        %v255 = vsel %vm253, %v221, 0
        %v258 = vsel %vm253, %v222, 0
        %260 = vmatprep.subr.mxu0 %v224
        %261 = vmatpush1.msra.mxu0 %v223
        %262 = vmatprep.subr.mxu0 %v226
        %263 = vmatpush1.msra.mxu0 %v225
        %264 = vmatprep.subr.mxu0 %v228
        %265 = vmatpush1.msra.mxu0 %v227
        %266 = vmatprep.subr.mxu0 %v230
        %267 = vmatpush1.msra.mxu0 %v229
        %268 = vmatprep.subr.mxu0 %v232
        %269 = vmatpush1.msra.mxu0 %v231
        %270 = vmatprep.subr.mxu0 %v234
        %271 = vmatpush1.msra.mxu0 %v233
        %272 = vmatprep.subr.mxu0 %v236
        %273 = vmatpush1.msra.mxu0 %v235
        %274 = vmatprep.subr.mxu0 %v238
        %275 = vmatpush1.msra.mxu0 %v237
        %276 = vmatprep.subr.mxu0 %v240
        %277 = vmatpush1.msra.mxu0 %v239
        %278 = vmatprep.subr.mxu0 0.0
        %279 = vmatpush1.msra.mxu0 0.0
        %280 = vmatprep.subr.mxu0 0.0
        %281 = vmatpush1.msra.mxu0 0.0
        %282 = vmatprep.subr.mxu0 0.0
        %283 = vmatpush1.msra.mxu0 0.0
        %284 = vmatprep.subr.mxu0 0.0
        %285 = vmatpush1.msra.mxu0 0.0
        %286 = vmatprep.subr.mxu0 0.0
        %287 = vmatpush1.msra.mxu0 0.0
        %288 = vmatprep.subr.mxu0 0.0
        %289 = vmatpush1.msra.mxu0 0.0
        %290 = vmatprep.subr.mxu0 0.0
        %291 = vmatpush1.msra.mxu0 0.0
        %292 = vmatprep.subr.mxu0 0.0
        %293 = vmatpush1.msra.mxu0 0.0
        %294 = vmatprep.subr.mxu0 0.0
        %295 = vmatpush1.msra.mxu0 0.0
        %296 = vmatprep.subr.mxu0 0.0
        %297 = vmatpush1.msra.mxu0 0.0
        %298 = vmatprep.subr.mxu0 0.0
        %299 = vmatpush1.msra.mxu0 0.0
        %300 = vmatprep.subr.mxu0 0.0
        %301 = vmatpush1.msra.mxu0 0.0
        %302 = vmatprep.subr.mxu0 0.0
        %303 = vmatpush1.msra.mxu0 0.0
        %304 = vmatprep.subr.mxu0 0.0
        %305 = vmatpush1.msra.mxu0 0.0
        %306 = vmatprep.subr.mxu0 0.0
        %307 = vmatpush1.msra.mxu0 0.0
        %308 = vmatprep.subr.mxu0 0.0
        %309 = vmatpush1.msra.mxu0 0.0
        %310 = vmatprep.subr.mxu0 0.0
        %311 = vmatpush1.msra.mxu0 0.0
        %312 = vmatprep.subr.mxu0 0.0
        %313 = vmatpush1.msra.mxu0 0.0
        %314 = vmatprep.subr.mxu0 0.0
        %315 = vmatpush1.msra.mxu0 0.0
        %316 = vmatprep.subr.mxu0 0.0
        %317 = vmatpush1.msra.mxu0 0.0
        %318 = vmatprep.subr.mxu0 0.0
        %319 = vmatpush1.msra.mxu0 0.0
        %320 = vmatprep.subr.mxu0 0.0
        %321 = vmatpush1.msra.mxu0 0.0
        %322 = vmatprep.subr.mxu0 0.0
        %323 = vmatpush1.msra.mxu0 0.0
        %324 = vmatprep.mubr.f32.mxu0 0.0
        %325 = vmatmul.mubr.f32.gmra.mrb[0].mxu0 %v255
        %v326 = vpop.f32.mrb[0].mxu0
        %v327 = vadd.f32 %v246, %v326
        %v328 = vpop.f32.mrb[0].mxu0
        %v329 = vadd.f32 %v246, %v328
        %330 = vmatprep.mubr.f32.mxu0 0.0
        %331 = vmatmul.mubr.f32.gmra.mrb[0].mxu0 %v258
        %v332 = vpop.f32.mrb[0].mxu0
        %v333 = vadd.f32 %v251, %v332
        %v334 = vpop.f32.mrb[0].mxu0
        %v335 = vadd.f32 %v251, %v334
        %336 = vdwg.mxu0
        %337 = vst [vmem:[%s218] sm:$0xff] %v327
        %338 = vst [vmem:[%s218 + $0x8] sm:$0xff] %v329
        %339 = vst [vmem:[%s218 + $0x10] sm:$0xff] %v333
        %340 = vst [vmem:[%s218 + $0x18] sm:$0xff] %v335
        %s341 = sand.u32 %s90, 1
        %s342 = sand.u32 %s90, 1
        %s343 = smul.addr %s342, 32
        %s344 = scalar_lea.vmem [#allocation3], %s343
        // Predicated region
        $region56: #{_lambda_.1} parent=50 // pred_check
          %p345 = pneg %p100
        $region57: #{_lambda_.1} parent=50 // pred_check_branch
          %347 = sbr.rel (%p345) target = $region59
        $region58: #{_lambda_.1} parent=50 // pred_region
          %s348 = smul.u32 2, %s14
          %s349 = smul.addr %s348, 8
          %s350 = scalar_lea.vmem %s3, %s349
          // Predicated region
          $region60: #{_lambda_.1} parent=58 // pred_check
            _
          $region61: #{_lambda_.1} parent=58 // pred_check_branch
            %352 = sbr.rel (0) target = $region63
          $region62: #{_lambda_.1} parent=58 // pred_region
            // Predicated region
            $region64: #{_lambda_.1} parent=62 // pred_check
              _
            $region65: #{_lambda_.1} parent=62 // pred_check_branch
              %354 = sbr.rel (0) target = $region67
            $region66: #{_lambda_.1} parent=62 // pred_region
              loop: start=0, step=1, limit=1
              $region68: #{_lambda_.1} parent=66 // loop_pre_header
                _
              $region69: #{_lambda_.1} parent=66 // loop_header
                %s356 = sphi 0, %s360
                %p357 = scmp.ge.s32.totalorder %s356, 1
                %s361 = sphi %s344, %s344
                %s362 = sphi %s350, %s350
              $region70: #{_lambda_.1} parent=66 // loop_header_branch
                %359 = sbr.rel (%p357) target = $region74
              $region71: #{_lambda_.1} parent=66 // loop_body
                %v363 = vld [vmem:[%s361] sm:$0xff]
                %364 = vst [vmem:[%s362] sm:$0xff] %v363
                %v365 = vld [vmem:[%s361 + $0x8] sm:$0xff]
                %366 = vst [vmem:[%s362 + $0x8] sm:$0xff] %v365
                %v367 = vld [vmem:[%s361 + $0x10] sm:$0xff]
                %368 = vst [vmem:[%s362 + $0x20] sm:$0xff] %v367
                %v369 = vld [vmem:[%s361 + $0x18] sm:$0xff]
                %370 = vst [vmem:[%s362 + $0x28] sm:$0xff] %v369
              $region72: #{_lambda_.1} parent=66 // loop_footer
                %s360 = sadd.s32 1, %s356
              $region73: #{_lambda_.1} parent=66 // loop_footer_branch
                %355 = sbr.rel target = $region69
              $region74: #{_lambda_.1} parent=66 // loop_exit
                _
            $region67: #{_lambda_.1} parent=62 // pred_fallthru
              _
            // Predicated region
            $region75: #{_lambda_.1} parent=62 // pred_check
              _
            $region76: #{_lambda_.1} parent=62 // pred_check_branch
              %372 = sbr.rel target = $region78
            $region77: #{_lambda_.1} parent=62 // pred_region
              _
            $region78: #{_lambda_.1} parent=62 // pred_fallthru
              _
          $region63: #{_lambda_.1} parent=58 // pred_fallthru
            _
          %373 = vnop
        $region59: #{_lambda_.1} parent=50 // pred_fallthru
          _
      $region51: #{_lambda_.1} parent=5 // pred_fallthru
        _
      %p374 = scmp.le.s32.totalorder 2, %s9
      // Predicated region
      $region79: #{_lambda_.1} parent=5 // pred_check
        %p375 = pneg %p374
      $region80: #{_lambda_.1} parent=5 // pred_check_branch
        %377 = sbr.rel (%p375) target = $region82
      $region81: #{_lambda_.1} parent=5 // pred_region
        %s378 = ssub.s32 %s9, 2
        // Predicated region
        $region83: #{_lambda_.1} parent=81 // pred_check
          %p379 = pneg %p106
        $region84: #{_lambda_.1} parent=81 // pred_check_branch
          %381 = sbr.rel (%p379) target = $region86
        $region85: #{_lambda_.1} parent=81 // pred_region
          %s382 = sand.u32 %s91, 1
          %s383 = sand.u32 %s91, 1
          %s384 = smul.addr %s383, 32
          %s385 = scalar_lea.vmem [#allocation3], %s384
        $region86: #{_lambda_.1} parent=81 // pred_fallthru
          _
      $region82: #{_lambda_.1} parent=5 // pred_fallthru
        _
    $region6: #{_lambda_.1} parent=1 // loop_footer
      %s13 = sadd.s32 1, %s9
    $region7: #{_lambda_.1} parent=1 // loop_footer_branch
      %8 = sbr.rel target = $region3
    $region8: #{_lambda_.1} parent=1 // loop_exit
      _

</llo_original>
